<compile_context>
chip_gen: v7x
topology: tpu7x:2x2x1
jax: 0.10.0
libtpu: 0.0.40
codegen_flags: <defaults>
</compile_context>

<pallas_src>
import jax
import jax.numpy as jnp
from jax.experimental import pallas as pl
from jax.experimental.pallas import tpu as pltpu


_MAX_TILE_B = 8192  # VALU-bound kernel: big batch tiles amortize grid-step overhead


def _num_tensorcores_per_chip():
    """Best-effort TensorCore-per-chip count (v7x: 2; v5e/v6e: 1)."""
    try:
        kind = (getattr(jax.devices()[0], "device_kind", "") or "").lower()
        return 2 if "v7" in kind else 1
    except Exception:
        return 1


def _choose_tile_b(B, tile_b=None):
    """Pick the batch tile.

    Rules:
      * tile is either the full batch B or a multiple of 128 (lowering rule),
      * capped at _MAX_TILE_B,
      * on multi-TC chips (v7x) sized so the 'parallel' grid has >= n_tc steps.
    """
    n_tc = _num_tensorcores_per_chip()
    if tile_b is None:
        tile_b = _MAX_TILE_B
        if n_tc > 1 and B > 128:
            per_core = pl.cdiv(B, n_tc)
            tile_b = min(tile_b, 128 * pl.cdiv(per_core, 128))
    if tile_b >= B:
        return B
    tb = max(128, (tile_b // 128) * 128)
    return B if tb >= B else tb


def critic_kernel(xT_ref, w1_ref, b1_ref, w2_ref, b2_ref, o_ref):
    # xT: (K, tB)  -- batch on lanes
    # w1: (H, K), b1: (H, 1), w2: (H, 1)  -- VMEM resident
    # b2: (1, 1)   -- SMEM scalar
    # o : (1, tB)  -- lane-dense output row
    xT = xT_ref[...]
    w1 = w1_ref[...]
    K = xT.shape[0]

    # Layer 1: K explicit broadcast-MACs on the VPU.  (K=3 on the MXU would be
    # >97% zero padding plus a full push/drain latency.)
    acc = w1[:, 0:1] * xT[0:1, :]                       # (H, tB)
    for k in range(1, K):
        acc = acc + w1[:, k:k + 1] * xT[k:k + 1, :]
    h = jnp.maximum(acc + b1_ref[...], 0.0)             # (H, tB)

    # Layer 2 (N=1 value head): VPU multiply + XLU cross-sublane reduce
    # instead of a second MXU round-trip.
    v = jnp.sum(h * w2_ref[...], axis=0, keepdims=True) + b2_ref[0, 0]  # (1, tB)
    o_ref[...] = v.astype(o_ref.dtype)


def critic_forward_xt(xT, w1, b1, w2, b2, *, tile_b=None):
    """Fast path: x already laid out as (n_states, B).  Returns (B, 1)."""
    n_states, B = xT.shape
    H = w1.shape[0]
    assert w1.shape == (H, n_states)
    assert b1.shape == (H, 1)
    assert w2.shape == (H, 1)
    assert b2.shape == (1, 1)

    tb = _choose_tile_b(B, tile_b)
    grid = (pl.cdiv(B, tb),)

    flops = 2 * B * H * (n_states + 1)
    bytes_accessed = 4 * (B * n_states + B + H * n_states + 2 * H + 1)

    out = pl.pallas_call(
        critic_kernel,
        out_shape=jax.ShapeDtypeStruct((1, B), jnp.float32),
        grid=grid,
        in_specs=[
            pl.BlockSpec((n_states, tb), lambda i: (0, i)),      # x^T, blocked over batch
            pl.BlockSpec((H, n_states), lambda i: (0, 0)),       # w1, VMEM resident
            pl.BlockSpec((H, 1), lambda i: (0, 0)),              # b1, VMEM resident
            pl.BlockSpec((H, 1), lambda i: (0, 0)),              # w2, VMEM resident
            pl.BlockSpec(memory_space=pltpu.MemorySpace.SMEM),   # b2 scalar in SMEM
        ],
        out_specs=pl.BlockSpec((1, tb), lambda i: (0, i)),
        compiler_params=pltpu.CompilerParams(
            dimension_semantics=("parallel",),
            vmem_limit_bytes=64 * 1024 * 1024),
        cost_estimate=pl.CostEstimate(
            flops=flops, transcendentals=0, bytes_accessed=bytes_accessed),
    )(xT, w1, b1, w2, b2)

    # (1, B) -> (B, 1) preserves element order; metadata-only reshape keeps the
    # in-kernel store lane-dense.
    return out.reshape(B, 1)


def critic_forward(x, w1, b1, w2, b2, *, tile_b=None):
    """Spec-compatible entry point: x is (B, n_states) like the PyTorch module.

    Prefer `critic_forward_xt` with x produced directly as (n_states, B), or
    call this under jax.jit so the layout flip fuses into the surrounding
    program instead of being a standalone dispatch.
    """
    return critic_forward_xt(x.T, w1, b1, w2, b2, tile_b=tile_b)


def init_critic_params(key, n_states, hidden=128):
    # Deterministic synthetic init (PyTorch-Linear-style uniform bounds).
    k1, k2, k3, k4 = jax.random.split(key, 4)
    bound1 = 1.0 / jnp.sqrt(float(n_states))
    bound2 = 1.0 / jnp.sqrt(float(hidden))
    w1 = jax.random.uniform(k1, (hidden, n_states), jnp.float32, -bound1, bound1)
    b1 = jax.random.uniform(k2, (hidden, 1), jnp.float32, -bound1, bound1)
    w2 = jax.random.uniform(k3, (hidden, 1), jnp.float32, -bound2, bound2)
    b2 = jax.random.uniform(k4, (1, 1), jnp.float32, -bound2, bound2)
    return w1, b1, w2, b2


if __name__ == "__main__":
    key = jax.random.PRNGKey(0)
    k_x, k_p, k_x2 = jax.random.split(key, 3)

    n_states = 3   # Pendulum-v1 observation dim
    batch = 8

    x = jax.random.normal(k_x, (batch, n_states), dtype=jnp.float32)
    w1, b1, w2, b2 = init_critic_params(k_p, n_states, hidden=128)

    def reference(x_bn):
        # Plain-JAX reference (same math as the PyTorch module), f32-exact.
        h = jnp.maximum(
            jnp.dot(x_bn, w1.T, precision=jax.lax.Precision.HIGHEST) + b1.T, 0.0)
        return jnp.dot(h, w2, precision=jax.lax.Precision.HIGHEST) + b2

    # 1) Spec-faithful entry point under jit (layout flip fused into the program).
    fwd = jax.jit(critic_forward)
    v = jax.block_until_ready(fwd(x, w1, b1, w2, b2))
    assert v.shape == (batch, 1)
    assert jnp.allclose(v, reference(x), atol=1e-4, rtol=1e-4)

    # 2) Zero-transpose fast path with >1 grid step and a partial last batch
    #    tile (exercises the enforced multiple-of-128 tiling path).
    batch2 = 300
    xT2 = jax.random.normal(k_x2, (n_states, batch2), dtype=jnp.float32)
    v2 = jax.block_until_ready(critic_forward_xt(xT2, w1, b1, w2, b2, tile_b=128))
    assert v2.shape == (batch2, 1)
    assert jnp.allclose(v2, reference(xT2.T), atol=1e-4, rtol=1e-4)

    print("KERNEL_OK")
</pallas_src>

<mosaic_0001>
module attributes {stable_mosaic.version = 11 : i64} {
  func.func @critic_kernel(%arg0: i32, %arg1: memref<3x8xf32, #tpu.memory_space<vmem>>, %arg2: memref<128x3xf32, #tpu.memory_space<vmem>>, %arg3: memref<128x1xf32, #tpu.memory_space<vmem>>, %arg4: memref<128x1xf32, #tpu.memory_space<vmem>>, %arg5: memref<1x1xf32, #tpu.memory_space<smem>>, %arg6: memref<1x8xf32, #tpu.memory_space<vmem>>) attributes {dimension_semantics = [#tpu.dimension_semantics<parallel>], iteration_bounds = array<i64: 1>, scalar_prefetch = 0 : i64, scratch_operands = 0 : i64, tpu.core_type = #tpu.core_type<tc>, window_params = [{transform_indices = @transform_0, window_bounds = array<i64: 3, 8>}, {pipeline_mode = #tpu.pipeline_mode<synchronous>, transform_indices = @transform_1, window_bounds = array<i64: 128, 3>}, {pipeline_mode = #tpu.pipeline_mode<synchronous>, transform_indices = @transform_2, window_bounds = array<i64: 128, 1>}, {pipeline_mode = #tpu.pipeline_mode<synchronous>, transform_indices = @transform_3, window_bounds = array<i64: 128, 1>}, {transform_indices = @transform_4, window_bounds = array<i64: 1, 1>}, {transform_indices = @transform_5, window_bounds = array<i64: 1, 8>}]} {
    %c0 = arith.constant 0 : index
    %c0_0 = arith.constant 0 : index
    %0 = vector.load %arg1[%c0, %c0_0] : memref<3x8xf32, #tpu.memory_space<vmem>>, vector<3x8xf32>
    %c0_1 = arith.constant 0 : index
    %c0_2 = arith.constant 0 : index
    %1 = vector.load %arg2[%c0_1, %c0_2] : memref<128x3xf32, #tpu.memory_space<vmem>>, vector<128x3xf32>
    %2 = vector.extract_strided_slice %1 {offsets = [0, 0], sizes = [128, 1], strides = [1, 1]} : vector<128x3xf32> to vector<128x1xf32>
    %3 = vector.extract_strided_slice %0 {offsets = [0, 0], sizes = [1, 8], strides = [1, 1]} : vector<3x8xf32> to vector<1x8xf32>
    %4 = vector.broadcast %2 : vector<128x1xf32> to vector<128x8xf32>
    %5 = vector.broadcast %3 : vector<1x8xf32> to vector<128x8xf32>
    %6 = arith.mulf %4, %5 : vector<128x8xf32>
    %7 = vector.extract_strided_slice %1 {offsets = [0, 1], sizes = [128, 1], strides = [1, 1]} : vector<128x3xf32> to vector<128x1xf32>
    %8 = vector.extract_strided_slice %0 {offsets = [1, 0], sizes = [1, 8], strides = [1, 1]} : vector<3x8xf32> to vector<1x8xf32>
    %9 = vector.broadcast %7 : vector<128x1xf32> to vector<128x8xf32>
    %10 = vector.broadcast %8 : vector<1x8xf32> to vector<128x8xf32>
    %11 = arith.mulf %9, %10 : vector<128x8xf32>
    %12 = arith.addf %6, %11 : vector<128x8xf32>
    %13 = vector.extract_strided_slice %1 {offsets = [0, 2], sizes = [128, 1], strides = [1, 1]} : vector<128x3xf32> to vector<128x1xf32>
    %14 = vector.extract_strided_slice %0 {offsets = [2, 0], sizes = [1, 8], strides = [1, 1]} : vector<3x8xf32> to vector<1x8xf32>
    %15 = vector.broadcast %13 : vector<128x1xf32> to vector<128x8xf32>
    %16 = vector.broadcast %14 : vector<1x8xf32> to vector<128x8xf32>
    %17 = arith.mulf %15, %16 : vector<128x8xf32>
    %18 = arith.addf %12, %17 : vector<128x8xf32>
    %c0_3 = arith.constant 0 : index
    %c0_4 = arith.constant 0 : index
    %19 = vector.load %arg3[%c0_3, %c0_4] : memref<128x1xf32, #tpu.memory_space<vmem>>, vector<128x1xf32>
    %20 = vector.broadcast %19 : vector<128x1xf32> to vector<128x8xf32>
    %21 = arith.addf %18, %20 : vector<128x8xf32>
    %cst = arith.constant 0.000000e+00 : f32
    %22 = vector.broadcast %cst : f32 to vector<128x8xf32>
    %23 = arith.maximumf %21, %22 : vector<128x8xf32>
    %c0_5 = arith.constant 0 : index
    %c0_6 = arith.constant 0 : index
    %24 = vector.load %arg4[%c0_5, %c0_6] : memref<128x1xf32, #tpu.memory_space<vmem>>, vector<128x1xf32>
    %25 = vector.broadcast %24 : vector<128x1xf32> to vector<128x8xf32>
    %26 = arith.mulf %23, %25 : vector<128x8xf32>
    %cst_7 = arith.constant dense<0.000000e+00> : vector<8xf32>
    %27 = vector.multi_reduction <add>, %26, %cst_7 [0] : vector<128x8xf32> to vector<8xf32>
    %28 = vector.shape_cast %27 : vector<8xf32> to vector<1x8xf32>
    %c0_8 = arith.constant 0 : index
    %c0_9 = arith.constant 0 : index
    %29 = memref.load %arg5[%c0_8, %c0_9] : memref<1x1xf32, #tpu.memory_space<smem>>
    %30 = vector.broadcast %29 : f32 to vector<1x8xf32>
    %31 = arith.addf %28, %30 : vector<1x8xf32>
    %c0_10 = arith.constant 0 : index
    %c0_11 = arith.constant 0 : index
    %32 = vector.load %arg6[%c0_10, %c0_11] : memref<1x8xf32, #tpu.memory_space<vmem>>, vector<1x8xf32>
    tpu.vector_store %arg6[%c0_10, %c0_11], %31 {strides = array<i32>} : memref<1x8xf32, #tpu.memory_space<vmem>>, vector<1x8xf32>,
    return
  }
  func.func @transform_0(%arg0: i32) -> (i32, i32) {
    %c0_i32 = arith.constant 0 : i32
    %c0_i32_0 = arith.constant 0 : i32
    return %c0_i32, %arg0 : i32, i32
  }
  func.func @transform_1(%arg0: i32) -> (i32, i32) {
    %c0_i32 = arith.constant 0 : i32
    %c0_i32_0 = arith.constant 0 : i32
    %c0_i32_1 = arith.constant 0 : i32
    return %c0_i32, %c0_i32_0 : i32, i32
  }
  func.func @transform_2(%arg0: i32) -> (i32, i32) {
    %c0_i32 = arith.constant 0 : i32
    %c0_i32_0 = arith.constant 0 : i32
    %c0_i32_1 = arith.constant 0 : i32
    return %c0_i32, %c0_i32_0 : i32, i32
  }
  func.func @transform_3(%arg0: i32) -> (i32, i32) {
    %c0_i32 = arith.constant 0 : i32
    %c0_i32_0 = arith.constant 0 : i32
    %c0_i32_1 = arith.constant 0 : i32
    return %c0_i32, %c0_i32_0 : i32, i32
  }
  func.func @transform_4(%arg0: i32) -> (i32, i32) {
    %c0_i32 = arith.constant 0 : i32
    %c0_i32_0 = arith.constant 0 : i32
    %c0_i32_1 = arith.constant 0 : i32
    return %c0_i32, %c0_i32_0 : i32, i32
  }
  func.func @transform_5(%arg0: i32) -> (i32, i32) {
    %c0_i32 = arith.constant 0 : i32
    %c0_i32_0 = arith.constant 0 : i32
    return %c0_i32, %arg0 : i32, i32
  }
}

</mosaic_0001>

<llo_original>
// kernel: critic_forward.1
$region0: #{critic_forward.1}
  #allocation0 [shape = 'u32[]', space=smem, size = 0x4, offset = 0x4, fixed_abs, tag = 'smem constant byte address 0x4 - core index']
  #allocation1 [shape = 'u32[144,128]{1,0:T(1,128)}', space=vmem, size = 0x12000, scoped, tag = 'internal scratch']
  #allocation2 [shape = 'f32[1,1]{1,0:T(1,128)S(6)}', space=smem, size = 0x200, scoped, tag = 'scoped memory for critic_forward.1']
  %s0 = inlined_call_operand.hbm [shape: f32[3,8], index: 0, kind: input, shape index: {}]
  %s1 = inlined_call_operand.hbm [shape: f32[128,3], index: 1, kind: input, shape index: {}]
  %s2 = inlined_call_operand.hbm [shape: f32[128,1], index: 2, kind: input, shape index: {}]
  %s3 = inlined_call_operand.hbm [shape: f32[128,1], index: 3, kind: input, shape index: {}]
  %s4 = inlined_call_operand.<no memory space> [shape: f32[1,1], index: 4, kind: input, shape index: {}]
  %s5 = inlined_call_operand.hbm [shape: f32[1,8], index: 5, kind: output, shape index: {}]
  %s6 = sld [smem:[#allocation0]]
  $region46: #{critic_forward.1} parent=0
    _
  %s8 = ssub.s32 1, %s6
  %s9 = scalar_select 0, %s8, %s6
  %10 = sst [smem:[#allocation2]] %s4
  $region1: #{critic_forward.1} parent=0
    #allocation3 [shape = 'u8[2048]{0}', space=vmem, size = 0x800, scoped, tag = 'input window, operand 0, single buffered']
    #allocation4 [shape = 's32[1]{0}', space=sflag, size = 0x4, scoped, tag = 'scoped memory for critic_forward.1']
    #allocation5 [shape = 's32[1]{0}', space=sflag, size = 0x4, scoped, tag = 'scoped memory for critic_forward.1']
    #allocation6 [shape = 'u8[65536]{0}', space=vmem, size = 0x10000, scoped, tag = 'input window, operand 1, single buffered']
    #allocation7 [shape = 's32[1]{0}', space=sflag, size = 0x4, scoped, tag = 'scoped memory for critic_forward.1']
    #allocation8 [shape = 'u8[65536]{0}', space=vmem, size = 0x10000, scoped, tag = 'input window, operand 2, single buffered']
    #allocation9 [shape = 'u8[65536]{0}', space=vmem, size = 0x10000, scoped, tag = 'input window, operand 3, single buffered']
    #allocation10 [shape = 's32[1]{0}', space=sflag, size = 0x4, scoped, tag = 'scoped memory for critic_forward.1']
    #allocation11 [shape = 'u8[512]{0}', space=vmem, size = 0x400, scoped, tag = 'output window, operand 0, single buffered']
    %11 = vsyncpa [#allocation4], 0
    %12 = vsyncpa [#allocation7], 0
    %13 = vsyncpa [#allocation10], 0
    %14 = vsyncpa [#allocation5], 0
    // Predicated region
    $region2: #{critic_forward.1} parent=1 // pred_check
      _
    $region3: #{critic_forward.1} parent=1 // pred_check_branch
      %16 = sbr.rel (0) target = $region5
    $region4: #{critic_forward.1} parent=1 // pred_region
      %s18 = ssub.s32 64, 64
      %19 = vsyncadd [#allocation4], %s18
      %s21 = sshll.u32 [#allocation3], 4
      %s22 = int_to_ptr.vmem [resolvable:$true] %s21
      %24 = dma.hbm_to_vmem [thread:$0]  %s0, 64, %s22, [#allocation4]
    $region5: #{critic_forward.1} parent=1 // pred_fallthru
      _
    // Predicated region
    $region6: #{critic_forward.1} parent=1 // pred_check
      _
    $region7: #{critic_forward.1} parent=1 // pred_check_branch
      %26 = sbr.rel (0) target = $region9
    $region8: #{critic_forward.1} parent=1 // pred_region
      %s28 = ssub.s32 2048, 2048
      %29 = vsyncadd [#allocation7], %s28
      %s30 = sshll.u32 [#allocation6], 4
      %s31 = int_to_ptr.vmem [resolvable:$true] %s30
      %36 = dma.hbm_to_vmem [thread:$0]  %s1, 2048, %s31, [#allocation7], 128, 128, 8
    $region9: #{critic_forward.1} parent=1 // pred_fallthru
      _
    // Predicated region
    $region10: #{critic_forward.1} parent=1 // pred_check
      _
    $region11: #{critic_forward.1} parent=1 // pred_check_branch
      %38 = sbr.rel (0) target = $region13
    $region12: #{critic_forward.1} parent=1 // pred_region
      %s40 = ssub.s32 2048, 2048
      %41 = vsyncadd [#allocation7], %s40
      %s42 = sshll.u32 [#allocation8], 4
      %s43 = int_to_ptr.vmem [resolvable:$true] %s42
      %48 = dma.hbm_to_vmem [thread:$0]  %s2, 2048, %s43, [#allocation7], 128, 128, 8
    $region13: #{critic_forward.1} parent=1 // pred_fallthru
      _
    // Predicated region
    $region14: #{critic_forward.1} parent=1 // pred_check
      _
    $region15: #{critic_forward.1} parent=1 // pred_check_branch
      %50 = sbr.rel (0) target = $region17
    $region16: #{critic_forward.1} parent=1 // pred_region
      %s52 = ssub.s32 2048, 2048
      %53 = vsyncadd [#allocation10], %s52
      %s54 = sshll.u32 [#allocation9], 4
      %s55 = int_to_ptr.vmem [resolvable:$true] %s54
      %60 = dma.hbm_to_vmem [thread:$0]  %s3, 2048, %s55, [#allocation10], 128, 128, 8
    $region17: #{critic_forward.1} parent=1 // pred_fallthru
      _
    // Predicated region
    $region18: #{critic_forward.1} parent=1 // pred_check
      _
    $region19: #{critic_forward.1} parent=1 // pred_check_branch
      %62 = sbr.rel (0) target = $region21
    $region20: #{critic_forward.1} parent=1 // pred_region
      _
    $region21: #{critic_forward.1} parent=1 // pred_fallthru
      _
    // Predicated region
    $region22: #{critic_forward.1} parent=1 // pred_check
      _
    $region23: #{critic_forward.1} parent=1 // pred_check_branch
      %64 = sbr.rel (0) target = $region25
    $region24: #{critic_forward.1} parent=1 // pred_region
      %65 = dma.done [#allocation4], 64
    $region25: #{critic_forward.1} parent=1 // pred_fallthru
      _
    // Predicated region
    $region26: #{critic_forward.1} parent=1 // pred_check
      _
    $region27: #{critic_forward.1} parent=1 // pred_check_branch
      %67 = sbr.rel (0) target = $region29
    $region28: #{critic_forward.1} parent=1 // pred_region
      %68 = dma.done [#allocation7], 2048
    $region29: #{critic_forward.1} parent=1 // pred_fallthru
      _
    // Predicated region
    $region30: #{critic_forward.1} parent=1 // pred_check
      _
    $region31: #{critic_forward.1} parent=1 // pred_check_branch
      %70 = sbr.rel (0) target = $region33
    $region32: #{critic_forward.1} parent=1 // pred_region
      %71 = dma.done [#allocation7], 2048
    $region33: #{critic_forward.1} parent=1 // pred_fallthru
      _
    // Predicated region
    $region34: #{critic_forward.1} parent=1 // pred_check
      _
    $region35: #{critic_forward.1} parent=1 // pred_check_branch
      %73 = sbr.rel (0) target = $region37
    $region36: #{critic_forward.1} parent=1 // pred_region
      %74 = dma.done [#allocation10], 2048
    $region37: #{critic_forward.1} parent=1 // pred_fallthru
      _
    %v75 = vld [vmem:[#allocation3] sm:$0x7]
    %v76 = vld [vmem:[#allocation6] sm:$0xff]
    %v77 = vld [vmem:[#allocation6 + $0x8] sm:$0xff]
    %v78 = vld [vmem:[#allocation6 + $0x10] sm:$0xff]
    %v79 = vld [vmem:[#allocation6 + $0x18] sm:$0xff]
    %v80 = vld [vmem:[#allocation6 + $0x20] sm:$0xff]
    %v81 = vld [vmem:[#allocation6 + $0x28] sm:$0xff]
    %v82 = vld [vmem:[#allocation6 + $0x30] sm:$0xff]
    %v83 = vld [vmem:[#allocation6 + $0x38] sm:$0xff]
    %v84 = vld [vmem:[#allocation6 + $0x40] sm:$0xff]
    %v85 = vld [vmem:[#allocation6 + $0x48] sm:$0xff]
    %v86 = vld [vmem:[#allocation6 + $0x50] sm:$0xff]
    %v87 = vld [vmem:[#allocation6 + $0x58] sm:$0xff]
    %v88 = vld [vmem:[#allocation6 + $0x60] sm:$0xff]
    %v89 = vld [vmem:[#allocation6 + $0x68] sm:$0xff]
    %v90 = vld [vmem:[#allocation6 + $0x70] sm:$0xff]
    %v91 = vld [vmem:[#allocation6 + $0x78] sm:$0xff]
    %93 = vset.pattern.permute.xlu0 0
    %94 = vperm.xlu0 %93, %v76
    %v95 = vpop.permute.xlu0 %94
    %98 = vset.pattern.permute.xlu0 0
    %99 = vperm.xlu0 %98, %v77
    %v100 = vpop.permute.xlu0 %99
    %103 = vset.pattern.permute.xlu0 0
    %104 = vperm.xlu0 %103, %v78
    %v105 = vpop.permute.xlu0 %104
    %108 = vset.pattern.permute.xlu0 0
    %109 = vperm.xlu0 %108, %v79
    %v110 = vpop.permute.xlu0 %109
    %113 = vset.pattern.permute.xlu0 0
    %114 = vperm.xlu0 %113, %v80
    %v115 = vpop.permute.xlu0 %114
    %118 = vset.pattern.permute.xlu0 0
    %119 = vperm.xlu0 %118, %v81
    %v120 = vpop.permute.xlu0 %119
    %123 = vset.pattern.permute.xlu0 0
    %124 = vperm.xlu0 %123, %v82
    %v125 = vpop.permute.xlu0 %124
    %128 = vset.pattern.permute.xlu0 0
    %129 = vperm.xlu0 %128, %v83
    %v130 = vpop.permute.xlu0 %129
    %133 = vset.pattern.permute.xlu0 0
    %134 = vperm.xlu0 %133, %v84
    %v135 = vpop.permute.xlu0 %134
    %138 = vset.pattern.permute.xlu0 0
    %139 = vperm.xlu0 %138, %v85
    %v140 = vpop.permute.xlu0 %139
    %143 = vset.pattern.permute.xlu0 0
    %144 = vperm.xlu0 %143, %v86
    %v145 = vpop.permute.xlu0 %144
    %148 = vset.pattern.permute.xlu0 0
    %149 = vperm.xlu0 %148, %v87
    %v150 = vpop.permute.xlu0 %149
    %153 = vset.pattern.permute.xlu0 0
    %154 = vperm.xlu0 %153, %v88
    %v155 = vpop.permute.xlu0 %154
    %158 = vset.pattern.permute.xlu0 0
    %159 = vperm.xlu0 %158, %v89
    %v160 = vpop.permute.xlu0 %159
    %163 = vset.pattern.permute.xlu0 0
    %164 = vperm.xlu0 %163, %v90
    %v165 = vpop.permute.xlu0 %164
    %168 = vset.pattern.permute.xlu0 0
    %169 = vperm.xlu0 %168, %v91
    %v170 = vpop.permute.xlu0 %169
    %v172 = vlaneseq
    %v173 = vshrl.u32 %v172, 7
    %v174 = vsub.s32 0, %v173
    %v175 = vrot.slane %v75, %v174
    %v176 = vmul.f32 %v95, %v175
    %v177 = vmul.f32 %v100, %v175
    %v178 = vmul.f32 %v105, %v175
    %v179 = vmul.f32 %v110, %v175
    %v180 = vmul.f32 %v115, %v175
    %v181 = vmul.f32 %v120, %v175
    %v182 = vmul.f32 %v125, %v175
    %v183 = vmul.f32 %v130, %v175
    %v184 = vmul.f32 %v135, %v175
    %v185 = vmul.f32 %v140, %v175
    %v186 = vmul.f32 %v145, %v175
    %v187 = vmul.f32 %v150, %v175
    %v188 = vmul.f32 %v155, %v175
    %v189 = vmul.f32 %v160, %v175
    %v190 = vmul.f32 %v165, %v175
    %v191 = vmul.f32 %v170, %v175
    %192 = vset.pattern.permute.xlu0 1
    %193 = vperm.xlu0 %192, %v76
    %v194 = vpop.permute.xlu0 %193
    %196 = vset.pattern.permute.xlu0 1
    %197 = vperm.xlu0 %196, %v77
    %v198 = vpop.permute.xlu0 %197
    %200 = vset.pattern.permute.xlu0 1
    %201 = vperm.xlu0 %200, %v78
    %v202 = vpop.permute.xlu0 %201
    %204 = vset.pattern.permute.xlu0 1
    %205 = vperm.xlu0 %204, %v79
    %v206 = vpop.permute.xlu0 %205
    %208 = vset.pattern.permute.xlu0 1
    %209 = vperm.xlu0 %208, %v80
    %v210 = vpop.permute.xlu0 %209
    %212 = vset.pattern.permute.xlu0 1
    %213 = vperm.xlu0 %212, %v81
    %v214 = vpop.permute.xlu0 %213
    %216 = vset.pattern.permute.xlu0 1
    %217 = vperm.xlu0 %216, %v82
    %v218 = vpop.permute.xlu0 %217
    %220 = vset.pattern.permute.xlu0 1
    %221 = vperm.xlu0 %220, %v83
    %v222 = vpop.permute.xlu0 %221
    %224 = vset.pattern.permute.xlu0 1
    %225 = vperm.xlu0 %224, %v84
    %v226 = vpop.permute.xlu0 %225
    %228 = vset.pattern.permute.xlu0 1
    %229 = vperm.xlu0 %228, %v85
    %v230 = vpop.permute.xlu0 %229
    %232 = vset.pattern.permute.xlu0 1
    %233 = vperm.xlu0 %232, %v86
    %v234 = vpop.permute.xlu0 %233
    %236 = vset.pattern.permute.xlu0 1
    %237 = vperm.xlu0 %236, %v87
    %v238 = vpop.permute.xlu0 %237
    %240 = vset.pattern.permute.xlu0 1
    %241 = vperm.xlu0 %240, %v88
    %v242 = vpop.permute.xlu0 %241
    %244 = vset.pattern.permute.xlu0 1
    %245 = vperm.xlu0 %244, %v89
    %v246 = vpop.permute.xlu0 %245
    %248 = vset.pattern.permute.xlu0 1
    %249 = vperm.xlu0 %248, %v90
    %v250 = vpop.permute.xlu0 %249
    %252 = vset.pattern.permute.xlu0 1
    %253 = vperm.xlu0 %252, %v91
    %v254 = vpop.permute.xlu0 %253
    %v256 = vlaneseq
    %v257 = vshrl.u32 %v256, 7
    %v258 = vsub.s32 1, %v257
    %v259 = vrot.slane %v75, %v258
    %v260 = vmul.f32 %v194, %v259
    %v261 = vmul.f32 %v198, %v259
    %v262 = vmul.f32 %v202, %v259
    %v263 = vmul.f32 %v206, %v259
    %v264 = vmul.f32 %v210, %v259
    %v265 = vmul.f32 %v214, %v259
    %v266 = vmul.f32 %v218, %v259
    %v267 = vmul.f32 %v222, %v259
    %v268 = vmul.f32 %v226, %v259
    %v269 = vmul.f32 %v230, %v259
    %v270 = vmul.f32 %v234, %v259
    %v271 = vmul.f32 %v238, %v259
    %v272 = vmul.f32 %v242, %v259
    %v273 = vmul.f32 %v246, %v259
    %v274 = vmul.f32 %v250, %v259
    %v275 = vmul.f32 %v254, %v259
    %v276 = vadd.f32 %v176, %v260
    %v277 = vadd.f32 %v177, %v261
    %v278 = vadd.f32 %v178, %v262
    %v279 = vadd.f32 %v179, %v263
    %v280 = vadd.f32 %v180, %v264
    %v281 = vadd.f32 %v181, %v265
    %v282 = vadd.f32 %v182, %v266
    %v283 = vadd.f32 %v183, %v267
    %v284 = vadd.f32 %v184, %v268
    %v285 = vadd.f32 %v185, %v269
    %v286 = vadd.f32 %v186, %v270
    %v287 = vadd.f32 %v187, %v271
    %v288 = vadd.f32 %v188, %v272
    %v289 = vadd.f32 %v189, %v273
    %v290 = vadd.f32 %v190, %v274
    %v291 = vadd.f32 %v191, %v275
    %292 = vset.pattern.permute.xlu0 2
    %293 = vperm.xlu0 %292, %v76
    %v294 = vpop.permute.xlu0 %293
    %296 = vset.pattern.permute.xlu0 2
    %297 = vperm.xlu0 %296, %v77
    %v298 = vpop.permute.xlu0 %297
    %300 = vset.pattern.permute.xlu0 2
    %301 = vperm.xlu0 %300, %v78
    %v302 = vpop.permute.xlu0 %301
    %304 = vset.pattern.permute.xlu0 2
    %305 = vperm.xlu0 %304, %v79
    %v306 = vpop.permute.xlu0 %305
    %308 = vset.pattern.permute.xlu0 2
    %309 = vperm.xlu0 %308, %v80
    %v310 = vpop.permute.xlu0 %309
    %312 = vset.pattern.permute.xlu0 2
    %313 = vperm.xlu0 %312, %v81
    %v314 = vpop.permute.xlu0 %313
    %316 = vset.pattern.permute.xlu0 2
    %317 = vperm.xlu0 %316, %v82
    %v318 = vpop.permute.xlu0 %317
    %320 = vset.pattern.permute.xlu0 2
    %321 = vperm.xlu0 %320, %v83
    %v322 = vpop.permute.xlu0 %321
    %324 = vset.pattern.permute.xlu0 2
    %325 = vperm.xlu0 %324, %v84
    %v326 = vpop.permute.xlu0 %325
    %328 = vset.pattern.permute.xlu0 2
    %329 = vperm.xlu0 %328, %v85
    %v330 = vpop.permute.xlu0 %329
    %332 = vset.pattern.permute.xlu0 2
    %333 = vperm.xlu0 %332, %v86
    %v334 = vpop.permute.xlu0 %333
    %336 = vset.pattern.permute.xlu0 2
    %337 = vperm.xlu0 %336, %v87
    %v338 = vpop.permute.xlu0 %337
    %340 = vset.pattern.permute.xlu0 2
    %341 = vperm.xlu0 %340, %v88
    %v342 = vpop.permute.xlu0 %341
    %344 = vset.pattern.permute.xlu0 2
    %345 = vperm.xlu0 %344, %v89
    %v346 = vpop.permute.xlu0 %345
    %348 = vset.pattern.permute.xlu0 2
    %349 = vperm.xlu0 %348, %v90
    %v350 = vpop.permute.xlu0 %349
    %352 = vset.pattern.permute.xlu0 2
    %353 = vperm.xlu0 %352, %v91
    %v354 = vpop.permute.xlu0 %353
    %v356 = vlaneseq
    %v357 = vshrl.u32 %v356, 7
    %v358 = vsub.s32 2, %v357
    %v359 = vrot.slane %v75, %v358
    %v360 = vmul.f32 %v294, %v359
    %v361 = vmul.f32 %v298, %v359
    %v362 = vmul.f32 %v302, %v359
    %v363 = vmul.f32 %v306, %v359
    %v364 = vmul.f32 %v310, %v359
    %v365 = vmul.f32 %v314, %v359
    %v366 = vmul.f32 %v318, %v359
    %v367 = vmul.f32 %v322, %v359
    %v368 = vmul.f32 %v326, %v359
    %v369 = vmul.f32 %v330, %v359
    %v370 = vmul.f32 %v334, %v359
    %v371 = vmul.f32 %v338, %v359
    %v372 = vmul.f32 %v342, %v359
    %v373 = vmul.f32 %v346, %v359
    %v374 = vmul.f32 %v350, %v359
    %v375 = vmul.f32 %v354, %v359
    %v376 = vadd.f32 %v276, %v360
    %v377 = vadd.f32 %v277, %v361
    %v378 = vadd.f32 %v278, %v362
    %v379 = vadd.f32 %v279, %v363
    %v380 = vadd.f32 %v280, %v364
    %v381 = vadd.f32 %v281, %v365
    %v382 = vadd.f32 %v282, %v366
    %v383 = vadd.f32 %v283, %v367
    %v384 = vadd.f32 %v284, %v368
    %v385 = vadd.f32 %v285, %v369
    %v386 = vadd.f32 %v286, %v370
    %v387 = vadd.f32 %v287, %v371
    %v388 = vadd.f32 %v288, %v372
    %v389 = vadd.f32 %v289, %v373
    %v390 = vadd.f32 %v290, %v374
    %v391 = vadd.f32 %v291, %v375
    %v392 = vld [vmem:[#allocation8] sm:$0xff]
    %v393 = vld [vmem:[#allocation8 + $0x8] sm:$0xff]
    %v394 = vld [vmem:[#allocation8 + $0x10] sm:$0xff]
    %v395 = vld [vmem:[#allocation8 + $0x18] sm:$0xff]
    %v396 = vld [vmem:[#allocation8 + $0x20] sm:$0xff]
    %v397 = vld [vmem:[#allocation8 + $0x28] sm:$0xff]
    %v398 = vld [vmem:[#allocation8 + $0x30] sm:$0xff]
    %v399 = vld [vmem:[#allocation8 + $0x38] sm:$0xff]
    %v400 = vld [vmem:[#allocation8 + $0x40] sm:$0xff]
    %v401 = vld [vmem:[#allocation8 + $0x48] sm:$0xff]
    %v402 = vld [vmem:[#allocation8 + $0x50] sm:$0xff]
    %v403 = vld [vmem:[#allocation8 + $0x58] sm:$0xff]
    %v404 = vld [vmem:[#allocation8 + $0x60] sm:$0xff]
    %v405 = vld [vmem:[#allocation8 + $0x68] sm:$0xff]
    %v406 = vld [vmem:[#allocation8 + $0x70] sm:$0xff]
    %v407 = vld [vmem:[#allocation8 + $0x78] sm:$0xff]
    %409 = vset.pattern.permute.xlu0 0
    %410 = vperm.xlu0 %409, %v392
    %v411 = vpop.permute.xlu0 %410
    %414 = vset.pattern.permute.xlu0 0
    %415 = vperm.xlu0 %414, %v393
    %v416 = vpop.permute.xlu0 %415
    %419 = vset.pattern.permute.xlu0 0
    %420 = vperm.xlu0 %419, %v394
    %v421 = vpop.permute.xlu0 %420
    %424 = vset.pattern.permute.xlu0 0
    %425 = vperm.xlu0 %424, %v395
    %v426 = vpop.permute.xlu0 %425
    %429 = vset.pattern.permute.xlu0 0
    %430 = vperm.xlu0 %429, %v396
    %v431 = vpop.permute.xlu0 %430
    %434 = vset.pattern.permute.xlu0 0
    %435 = vperm.xlu0 %434, %v397
    %v436 = vpop.permute.xlu0 %435
    %439 = vset.pattern.permute.xlu0 0
    %440 = vperm.xlu0 %439, %v398
    %v441 = vpop.permute.xlu0 %440
    %444 = vset.pattern.permute.xlu0 0
    %445 = vperm.xlu0 %444, %v399
    %v446 = vpop.permute.xlu0 %445
    %449 = vset.pattern.permute.xlu0 0
    %450 = vperm.xlu0 %449, %v400
    %v451 = vpop.permute.xlu0 %450
    %454 = vset.pattern.permute.xlu0 0
    %455 = vperm.xlu0 %454, %v401
    %v456 = vpop.permute.xlu0 %455
    %459 = vset.pattern.permute.xlu0 0
    %460 = vperm.xlu0 %459, %v402
    %v461 = vpop.permute.xlu0 %460
    %464 = vset.pattern.permute.xlu0 0
    %465 = vperm.xlu0 %464, %v403
    %v466 = vpop.permute.xlu0 %465
    %469 = vset.pattern.permute.xlu0 0
    %470 = vperm.xlu0 %469, %v404
    %v471 = vpop.permute.xlu0 %470
    %474 = vset.pattern.permute.xlu0 0
    %475 = vperm.xlu0 %474, %v405
    %v476 = vpop.permute.xlu0 %475
    %479 = vset.pattern.permute.xlu0 0
    %480 = vperm.xlu0 %479, %v406
    %v481 = vpop.permute.xlu0 %480
    %484 = vset.pattern.permute.xlu0 0
    %485 = vperm.xlu0 %484, %v407
    %v486 = vpop.permute.xlu0 %485
    %v488 = vadd.f32 %v376, %v411
    %v489 = vadd.f32 %v377, %v416
    %v490 = vadd.f32 %v378, %v421
    %v491 = vadd.f32 %v379, %v426
    %v492 = vadd.f32 %v380, %v431
    %v493 = vadd.f32 %v381, %v436
    %v494 = vadd.f32 %v382, %v441
    %v495 = vadd.f32 %v383, %v446
    %v496 = vadd.f32 %v384, %v451
    %v497 = vadd.f32 %v385, %v456
    %v498 = vadd.f32 %v386, %v461
    %v499 = vadd.f32 %v387, %v466
    %v500 = vadd.f32 %v388, %v471
    %v501 = vadd.f32 %v389, %v476
    %v502 = vadd.f32 %v390, %v481
    %v503 = vadd.f32 %v391, %v486
    %v504 = vmax.f32 %v488, 0.0
    %v505 = vmax.f32 %v489, 0.0
    %v506 = vmax.f32 %v490, 0.0
    %v507 = vmax.f32 %v491, 0.0
    %v508 = vmax.f32 %v492, 0.0
    %v509 = vmax.f32 %v493, 0.0
    %v510 = vmax.f32 %v494, 0.0
    %v511 = vmax.f32 %v495, 0.0
    %v512 = vmax.f32 %v496, 0.0
    %v513 = vmax.f32 %v497, 0.0
    %v514 = vmax.f32 %v498, 0.0
    %v515 = vmax.f32 %v499, 0.0
    %v516 = vmax.f32 %v500, 0.0
    %v517 = vmax.f32 %v501, 0.0
    %v518 = vmax.f32 %v502, 0.0
    %v519 = vmax.f32 %v503, 0.0
    %v520 = vld [vmem:[#allocation9] sm:$0xff]
    %v521 = vld [vmem:[#allocation9 + $0x8] sm:$0xff]
    %v522 = vld [vmem:[#allocation9 + $0x10] sm:$0xff]
    %v523 = vld [vmem:[#allocation9 + $0x18] sm:$0xff]
    %v524 = vld [vmem:[#allocation9 + $0x20] sm:$0xff]
    %v525 = vld [vmem:[#allocation9 + $0x28] sm:$0xff]
    %v526 = vld [vmem:[#allocation9 + $0x30] sm:$0xff]
    %v527 = vld [vmem:[#allocation9 + $0x38] sm:$0xff]
    %v528 = vld [vmem:[#allocation9 + $0x40] sm:$0xff]
    %v529 = vld [vmem:[#allocation9 + $0x48] sm:$0xff]
    %v530 = vld [vmem:[#allocation9 + $0x50] sm:$0xff]
    %v531 = vld [vmem:[#allocation9 + $0x58] sm:$0xff]
    %v532 = vld [vmem:[#allocation9 + $0x60] sm:$0xff]
    %v533 = vld [vmem:[#allocation9 + $0x68] sm:$0xff]
    %v534 = vld [vmem:[#allocation9 + $0x70] sm:$0xff]
    %v535 = vld [vmem:[#allocation9 + $0x78] sm:$0xff]
    %537 = vset.pattern.permute.xlu0 0
    %538 = vperm.xlu0 %537, %v520
    %v539 = vpop.permute.xlu0 %538
    %542 = vset.pattern.permute.xlu0 0
    %543 = vperm.xlu0 %542, %v521
    %v544 = vpop.permute.xlu0 %543
    %547 = vset.pattern.permute.xlu0 0
    %548 = vperm.xlu0 %547, %v522
    %v549 = vpop.permute.xlu0 %548
    %552 = vset.pattern.permute.xlu0 0
    %553 = vperm.xlu0 %552, %v523
    %v554 = vpop.permute.xlu0 %553
    %557 = vset.pattern.permute.xlu0 0
    %558 = vperm.xlu0 %557, %v524
    %v559 = vpop.permute.xlu0 %558
    %562 = vset.pattern.permute.xlu0 0
    %563 = vperm.xlu0 %562, %v525
    %v564 = vpop.permute.xlu0 %563
    %567 = vset.pattern.permute.xlu0 0
    %568 = vperm.xlu0 %567, %v526
    %v569 = vpop.permute.xlu0 %568
    %572 = vset.pattern.permute.xlu0 0
    %573 = vperm.xlu0 %572, %v527
    %v574 = vpop.permute.xlu0 %573
    %577 = vset.pattern.permute.xlu0 0
    %578 = vperm.xlu0 %577, %v528
    %v579 = vpop.permute.xlu0 %578
    %582 = vset.pattern.permute.xlu0 0
    %583 = vperm.xlu0 %582, %v529
    %v584 = vpop.permute.xlu0 %583
    %587 = vset.pattern.permute.xlu0 0
    %588 = vperm.xlu0 %587, %v530
    %v589 = vpop.permute.xlu0 %588
    %592 = vset.pattern.permute.xlu0 0
    %593 = vperm.xlu0 %592, %v531
    %v594 = vpop.permute.xlu0 %593
    %597 = vset.pattern.permute.xlu0 0
    %598 = vperm.xlu0 %597, %v532
    %v599 = vpop.permute.xlu0 %598
    %602 = vset.pattern.permute.xlu0 0
    %603 = vperm.xlu0 %602, %v533
    %v604 = vpop.permute.xlu0 %603
    %607 = vset.pattern.permute.xlu0 0
    %608 = vperm.xlu0 %607, %v534
    %v609 = vpop.permute.xlu0 %608
    %612 = vset.pattern.permute.xlu0 0
    %613 = vperm.xlu0 %612, %v535
    %v614 = vpop.permute.xlu0 %613
    %v616 = vmul.f32 %v504, %v539
    %v617 = vmul.f32 %v505, %v544
    %v618 = vmul.f32 %v506, %v549
    %v619 = vmul.f32 %v507, %v554
    %v620 = vmul.f32 %v508, %v559
    %v621 = vmul.f32 %v509, %v564
    %v622 = vmul.f32 %v510, %v569
    %v623 = vmul.f32 %v511, %v574
    %v624 = vmul.f32 %v512, %v579
    %v625 = vmul.f32 %v513, %v584
    %v626 = vmul.f32 %v514, %v589
    %v627 = vmul.f32 %v515, %v594
    %v628 = vmul.f32 %v516, %v599
    %v629 = vmul.f32 %v517, %v604
    %v630 = vmul.f32 %v518, %v609
    %v631 = vmul.f32 %v519, %v614
    %vm632 = vcmask 64512
    %v633 = vsel %vm632, %v616, 0.0
    %v634 = vsel %vm632, %v617, 0.0
    %v635 = vadd.f32 %v633, %v634
    %v636 = vsel %vm632, %v618, 0.0
    %v637 = vadd.f32 %v635, %v636
    %v638 = vsel %vm632, %v619, 0.0
    %v639 = vadd.f32 %v637, %v638
    %v640 = vsel %vm632, %v620, 0.0
    %v641 = vadd.f32 %v639, %v640
    %v642 = vsel %vm632, %v621, 0.0
    %v643 = vadd.f32 %v641, %v642
    %v644 = vsel %vm632, %v622, 0.0
    %v645 = vadd.f32 %v643, %v644
    %v646 = vsel %vm632, %v623, 0.0
    %v647 = vadd.f32 %v645, %v646
    %v648 = vsel %vm632, %v624, 0.0
    %v649 = vadd.f32 %v647, %v648
    %v650 = vsel %vm632, %v625, 0.0
    %v651 = vadd.f32 %v649, %v650
    %v652 = vsel %vm632, %v626, 0.0
    %v653 = vadd.f32 %v651, %v652
    %v654 = vsel %vm632, %v627, 0.0
    %v655 = vadd.f32 %v653, %v654
    %v656 = vsel %vm632, %v628, 0.0
    %v657 = vadd.f32 %v655, %v656
    %v658 = vsel %vm632, %v629, 0.0
    %v659 = vadd.f32 %v657, %v658
    %v660 = vsel %vm632, %v630, 0.0
    %v661 = vadd.f32 %v659, %v660
    %v662 = vsel %vm632, %v631, 0.0
    %v663 = vadd.f32 %v661, %v662
    %v664 = vrot.slane %v663, 4
    %v665 = vadd.f32 %v663, %v664
    %v666 = vrot.slane %v665, 2
    %v667 = vadd.f32 %v665, %v666
    %v668 = vrot.slane %v667, 1
    %v669 = vadd.f32 %v667, %v668
    %s670 = sld [smem:[#allocation2]]
    %v671 = vstv %s670
    %v672 = vadd.f32 %v669, %v671
    %vm673 = vcmask 57344
    %674 = vst.msk [vmem:[#allocation11] sm:$0x1] %vm673, %v672
    // Predicated region
    $region38: #{critic_forward.1} parent=1 // pred_check
      _
    $region39: #{critic_forward.1} parent=1 // pred_check_branch
      %676 = sbr.rel (0) target = $region41
    $region40: #{critic_forward.1} parent=1 // pred_region
      %s678 = ssub.s32 16, 16
      %679 = vsyncadd [#allocation5], %s678
      %s681 = sshll.u32 [#allocation11], 4
      %s682 = int_to_ptr.vmem [resolvable:$true] %s681
      %684 = dma.vmem_to_hbm [thread:$0]  %s682, 16, %s5, [#allocation5]
    $region41: #{critic_forward.1} parent=1 // pred_fallthru
      _
    // Predicated region
    $region42: #{critic_forward.1} parent=1 // pred_check
      _
    $region43: #{critic_forward.1} parent=1 // pred_check_branch
      %686 = sbr.rel (0) target = $region45
    $region44: #{critic_forward.1} parent=1 // pred_region
      %687 = dma.done [#allocation5], 16
    $region45: #{critic_forward.1} parent=1 // pred_fallthru
      _
    %688 = vsyncpa [#allocation4], 1
    %689 = vsyncpa [#allocation7], 1
    %690 = vsyncpa [#allocation10], 1
    %691 = vsyncpa [#allocation5], 1

</llo_original>
